<compile_context>
chip_gen: v6e
topology: v6e:2x2x1
jax: 0.10.0
libtpu: 0.0.40
codegen_flags: <defaults>
</compile_context>

<pallas_src>
import jax
import jax.numpy as jnp
from jax.experimental import pallas as pl
from jax.experimental.pallas import tpu as pltpu

_MAX_BATCH_TILE = 1024   # step-overhead amortization: 512-1024 is the sweet spot
_MIN_GRID_STEPS = 4      # keep >= 2 (ideally >= 4) steps so v7x's 2 TCs both work
_SMALL_BATCH_MAX = 256   # below this, a single gridless block is cheapest


def _round_up(x, m):
    return ((x + m - 1) // m) * m


def _pick_batch_tile(B):
    """Largest batch tile <= 1024 that still leaves >= _MIN_GRID_STEPS grid steps,
    rounded to a sublane multiple (8)."""
    tb = min(_MAX_BATCH_TILE, _round_up(pl.cdiv(B, _MIN_GRID_STEPS), 8))
    return max(tb, 8)


def _linear_kernel(x_ref, w_ref, b_ref, o_ref):
    """o = x @ w + b on the MXU (w already pre-transposed to (K, N)).

    x_ref: (TB, K)  activations (f32 or bf16)
    w_ref: (K, N)   weight, (in, out) layout — resident across grid steps
    b_ref: (1, N)   bias, f32
    o_ref: (TB, N)  output
    """
    acc = jnp.dot(x_ref[...], w_ref[...], preferred_element_type=jnp.float32)
    o_ref[...] = (acc + b_ref[...]).astype(o_ref.dtype)


def prepare_linear_params(weight, bias, compute_dtype=jnp.float32):
    """One-time parameter prep (do NOT call per forward).

    weight: (out, in) PyTorch layout -> returned as (in, out) in compute_dtype.
    bias:   (out,)                   -> returned as (1, out) float32.
    """
    w_t = jnp.asarray(weight).T.astype(compute_dtype)          # (nodes, out)
    b2d = jnp.asarray(bias, dtype=jnp.float32).reshape(1, -1)  # (1, out)
    return w_t, b2d


def linear_pallas(x, w_t, b2d):
    """y = x @ w_t + b  (== x @ weight.T + bias, nn.Linear semantics).

    x:   (B, nodes)
    w_t: (nodes, out)  pre-transposed weight (see prepare_linear_params)
    b2d: (1, out)      bias
    returns (B, out) in x.dtype
    """
    B, K = x.shape
    K2, N = w_t.shape
    assert K == K2, "x feature dim must match weight in_features"
    out_dtype = x.dtype

    # Compute dtype follows the prepared weight (f32 default, bf16 optional).
    xc = x if x.dtype == w_t.dtype else x.astype(w_t.dtype)

    if B <= _SMALL_BATCH_MAX:
        # Small batch: single gridless block, whole operands in VMEM.
        # TODO(synk): at the spec size this should be fused into the caller's
        # kernel or left to XLA; kept standalone here so the script is runnable.
        return pl.pallas_call(
            _linear_kernel,
            out_shape=jax.ShapeDtypeStruct((B, N), out_dtype),
            in_specs=[
                pl.BlockSpec(memory_space=pltpu.MemorySpace.VMEM),
                pl.BlockSpec(memory_space=pltpu.MemorySpace.VMEM),
                pl.BlockSpec(memory_space=pltpu.MemorySpace.VMEM),
            ],
            out_specs=pl.BlockSpec(memory_space=pltpu.MemorySpace.VMEM),
        )(xc, w_t, b2d)

    # Large batch: tile B on a parallel grid axis.  W and bias use constant
    # index maps so they stay resident in VMEM across steps.  Non-divisible B
    # is handled by Pallas (ragged last block, masked writes) — no wrapper pad
    # or post-slice copies.
    tb = _pick_batch_tile(B)
    grid = (pl.cdiv(B, tb),)
    return pl.pallas_call(
        _linear_kernel,
        out_shape=jax.ShapeDtypeStruct((B, N), out_dtype),
        grid=grid,
        in_specs=[
            # x: tiled over the batch axis; last dim = full K (legal block).
            pl.BlockSpec((tb, K), lambda i: (i, 0)),
            # weight / bias: full-extent blocks, resident across grid steps.
            pl.BlockSpec((K, N), lambda i: (0, 0)),
            pl.BlockSpec((1, N), lambda i: (0, 0)),
        ],
        # Output last dim = full array dim (16) -> legal block; avoids 8x
        # padded writeback + slice that lane-padding to 128 would cost.
        out_specs=pl.BlockSpec((tb, N), lambda i: (i, 0)),
        compiler_params=pltpu.CompilerParams(
            dimension_semantics=("parallel",),
        ),
    )(xc, w_t, b2d)


if __name__ == "__main__":
    nodes, output, batch = 32, 16, 8

    key = jax.random.PRNGKey(0)
    kx, kw, kb = jax.random.split(key, 3)

    # Deterministic init mimicking nn.Linear's uniform(-1/sqrt(nodes), 1/sqrt(nodes)).
    bound = 1.0 / jnp.sqrt(jnp.float32(nodes))
    weight = jax.random.uniform(kw, (output, nodes), jnp.float32, -bound, bound)
    bias = jax.random.uniform(kb, (output,), jnp.float32, -bound, bound)
    x = jax.random.normal(kx, (batch, nodes), jnp.float32)

    # One-time parameter prep (outside the per-forward hot path).
    w_t, b2d = prepare_linear_params(weight, bias)

    fwd = jax.jit(linear_pallas)

    # Small-batch (gridless) path — matches the module spec.
    y = fwd(x, w_t, b2d)
    jax.block_until_ready(y)
    y_ref = x @ weight.T + bias
    assert y.shape == (batch, output)
    assert jnp.allclose(y, y_ref, atol=1e-5, rtol=1e-5)

    # Large-batch, non-divisible grid path (ragged last block, both TCs on v7x).
    x_big = jax.random.normal(kx, (3000, nodes), jnp.float32)
    y_big = fwd(x_big, w_t, b2d)
    jax.block_until_ready(y_big)
    ref_big = x_big @ weight.T + bias
    assert jnp.allclose(y_big, ref_big, atol=1e-4, rtol=1e-4)

    # Optional bf16 MXU path (halves x read traffic; looser tolerance).
    w_bf, b_bf = prepare_linear_params(weight, bias, jnp.bfloat16)
    y_bf = fwd(x_big, w_bf, b_bf)
    jax.block_until_ready(y_bf)
    assert jnp.allclose(y_bf, ref_big, atol=5e-2, rtol=5e-2)

    print("KERNEL_OK")
</pallas_src>

<mosaic_0001>
module attributes {stable_mosaic.version = 11 : i64} {
  func.func @_linear_kernel(%arg0: memref<8x32xf32, #tpu.memory_space<vmem>>, %arg1: memref<32x16xf32, #tpu.memory_space<vmem>>, %arg2: memref<1x16xf32, #tpu.memory_space<vmem>>, %arg3: memref<8x16xf32, #tpu.memory_space<vmem>>) attributes {dimension_semantics = [], scalar_prefetch = 0 : i64, scratch_operands = 0 : i64, tpu.core_type = #tpu.core_type<tc>} {
    %c0 = arith.constant 0 : index
    %c0_0 = arith.constant 0 : index
    %0 = vector.load %arg0[%c0, %c0_0] : memref<8x32xf32, #tpu.memory_space<vmem>>, vector<8x32xf32>
    %c0_1 = arith.constant 0 : index
    %c0_2 = arith.constant 0 : index
    %1 = vector.load %arg1[%c0_1, %c0_2] : memref<32x16xf32, #tpu.memory_space<vmem>>, vector<32x16xf32>
    %cst = arith.constant dense<0.000000e+00> : vector<8x16xf32>
    %2 = tpu.matmul %0, %1, %cst {dimension_numbers = #tpu.dot_dimension_numbers<[1], [0], [0], [1], [0, 0, 1, 1], [], []>} : vector<8x32xf32>, vector<32x16xf32>, vector<8x16xf32> -> vector<8x16xf32>
    %c0_3 = arith.constant 0 : index
    %c0_4 = arith.constant 0 : index
    %3 = vector.load %arg2[%c0_3, %c0_4] : memref<1x16xf32, #tpu.memory_space<vmem>>, vector<1x16xf32>
    %4 = vector.broadcast %3 : vector<1x16xf32> to vector<8x16xf32>
    %5 = arith.addf %2, %4 : vector<8x16xf32>
    %c0_5 = arith.constant 0 : index
    %c0_6 = arith.constant 0 : index
    %6 = vector.load %arg3[%c0_5, %c0_6] : memref<8x16xf32, #tpu.memory_space<vmem>>, vector<8x16xf32>
    tpu.vector_store %arg3[%c0_5, %c0_6], %5 {strides = array<i32>} : memref<8x16xf32, #tpu.memory_space<vmem>>, vector<8x16xf32>,
    return
  }
}

</mosaic_0001>

<llo_original>
// kernel: linear_pallas.1
$region0: #{linear_pallas.1}
  #allocation0 [shape = 'u32[]', space=smem, size = 0x4, offset = 0x4, fixed_abs, tag = 'smem constant byte address 0x4 - core index']
  #allocation1 [shape = 'u32[144,128]{1,0:T(1,128)}', space=vmem, size = 0x12000, scoped, tag = 'internal scratch']
  %s0 = inlined_call_operand.vmem [shape: f32[8,32], index: 0, kind: input, shape index: {}]
  %s1 = inlined_call_operand.vmem [shape: f32[32,16], index: 1, kind: input, shape index: {}]
  %s2 = inlined_call_operand.vmem [shape: f32[1,16], index: 2, kind: input, shape index: {}]
  %s3 = inlined_call_operand.hbm [shape: f32[8,16], index: 3, kind: output, shape index: {}]
  %s4 = sld [smem:[#allocation0]]
  $region22: #{linear_pallas.1} parent=0
    _
  %s6 = ssub.s32 1, %s4
  %s7 = scalar_select 0, %s6, %s4
  $region1: #{linear_pallas.1} parent=0
    #allocation2 [shape = 'u8[4096]{0}', space=vmem, size = 0x1000, scoped, tag = 'output window, operand 0, single buffered']
    #allocation3 [shape = 's32[1]{0}', space=sflag, size = 0x4, scoped, tag = 'scoped memory for linear_pallas.1']
    %8 = vsyncpa [#allocation3], 0
    // Predicated region
    $region2: #{linear_pallas.1} parent=1 // pred_check
      _
    $region3: #{linear_pallas.1} parent=1 // pred_check_branch
      %10 = sbr.rel (0) target = $region5
    $region4: #{linear_pallas.1} parent=1 // pred_region
      _
    $region5: #{linear_pallas.1} parent=1 // pred_fallthru
      _
    // Predicated region
    $region6: #{linear_pallas.1} parent=1 // pred_check
      _
    $region7: #{linear_pallas.1} parent=1 // pred_check_branch
      %12 = sbr.rel (0) target = $region9
    $region8: #{linear_pallas.1} parent=1 // pred_region
      _
    $region9: #{linear_pallas.1} parent=1 // pred_fallthru
      _
    // Predicated region
    $region10: #{linear_pallas.1} parent=1 // pred_check
      _
    $region11: #{linear_pallas.1} parent=1 // pred_check_branch
      %14 = sbr.rel (0) target = $region13
    $region12: #{linear_pallas.1} parent=1 // pred_region
      _
    $region13: #{linear_pallas.1} parent=1 // pred_fallthru
      _
    %v15 = vld [vmem:[%s0] sm:$0xff]
    %v16 = vld [vmem:[%s1] sm:$0xff]
    %v17 = vld [vmem:[%s1 + $0x8] sm:$0xff]
    %v18 = vld [vmem:[%s1 + $0x10] sm:$0xff]
    %v19 = vld [vmem:[%s1 + $0x18] sm:$0xff]
    %v20 = vld [vmem:[%s2] sm:$0x1]
    %v22 = vlaneseq
    %v23 = vshrl.u32 %v22, 7
    %v24 = vsub.s32 0, %v23
    %v25 = vrot.slane %v20, %v24
    %vm27 = vcmask 261120
    %v29 = vsel %vm27, %v15, 0
    %31 = vmatprep.subr.mxu0 0.0
    %32 = vmatpush1.msra.mxu0 0.0
    %33 = vmatprep.subr.mxu0 0.0
    %34 = vmatpush1.msra.mxu0 0.0
    %35 = vmatprep.subr.mxu0 0.0
    %36 = vmatpush1.msra.mxu0 0.0
    %37 = vmatprep.subr.mxu0 0.0
    %38 = vmatpush1.msra.mxu0 0.0
    %39 = vmatprep.subr.mxu0 0.0
    %40 = vmatpush1.msra.mxu0 0.0
    %41 = vmatprep.subr.mxu0 0.0
    %42 = vmatpush1.msra.mxu0 0.0
    %43 = vmatprep.subr.mxu0 0.0
    %44 = vmatpush1.msra.mxu0 0.0
    %45 = vmatprep.subr.mxu0 0.0
    %46 = vmatpush1.msra.mxu0 0.0
    %47 = vmatprep.subr.mxu0 0.0
    %48 = vmatpush1.msra.mxu0 0.0
    %49 = vmatprep.subr.mxu0 0.0
    %50 = vmatpush1.msra.mxu0 0.0
    %51 = vmatprep.subr.mxu0 0.0
    %52 = vmatpush1.msra.mxu0 0.0
    %53 = vmatprep.subr.mxu0 0.0
    %54 = vmatpush1.msra.mxu0 0.0
    %55 = vmatprep.subr.mxu0 0.0
    %56 = vmatpush1.msra.mxu0 %v19
    %57 = vmatprep.subr.mxu0 0.0
    %58 = vmatpush1.msra.mxu0 %v18
    %59 = vmatprep.subr.mxu0 0.0
    %60 = vmatpush1.msra.mxu0 %v17
    %61 = vmatprep.subr.mxu0 0.0
    %62 = vmatpush1.msra.mxu0 %v16
    %63 = vmatprep.subr.mxu0 0.0
    %64 = vmatpush2.msra.mxu0 0.0
    %65 = vmatprep.subr.mxu0 0.0
    %66 = vmatpush2.msra.mxu0 0.0
    %67 = vmatprep.subr.mxu0 0.0
    %68 = vmatpush2.msra.mxu0 0.0
    %69 = vmatprep.subr.mxu0 0.0
    %70 = vmatpush2.msra.mxu0 0.0
    %71 = vmatprep.subr.mxu0 0.0
    %72 = vmatpush2.msra.mxu0 0.0
    %73 = vmatprep.subr.mxu0 0.0
    %74 = vmatpush2.msra.mxu0 0.0
    %75 = vmatprep.subr.mxu0 0.0
    %76 = vmatpush2.msra.mxu0 0.0
    %77 = vmatprep.subr.mxu0 0.0
    %78 = vmatpush2.msra.mxu0 0.0
    %79 = vmatprep.subr.mxu0 0.0
    %80 = vmatpush2.msra.mxu0 0.0
    %81 = vmatprep.subr.mxu0 0.0
    %82 = vmatpush2.msra.mxu0 0.0
    %83 = vmatprep.subr.mxu0 0.0
    %84 = vmatpush2.msra.mxu0 0.0
    %85 = vmatprep.subr.mxu0 0.0
    %86 = vmatpush2.msra.mxu0 0.0
    %87 = vmatprep.subr.mxu0 0.0
    %88 = vmatpush2.msra.mxu0 0.0
    %89 = vmatprep.subr.mxu0 0.0
    %90 = vmatpush2.msra.mxu0 0.0
    %91 = vmatprep.subr.mxu0 0.0
    %92 = vmatpush2.msra.mxu0 0.0
    %93 = vmatprep.subr.mxu0 0.0
    %94 = vmatpush2.msra.mxu0 0.0
    %95 = vmatprep.mubr.f32.mxu0 0.0
    %96 = vmatmul.mubr.f32.gmra.mxu0 %v29
    %v97 = vpop.f32.mrf.mxu0
    %v98 = vadd.f32 %v25, %v97
    %v99 = vpop.f32.mrf.mxu0
    %100 = vdwg.mxu0
    %vm101 = vcmask 130048
    %102 = vst.msk [vmem:[#allocation2] sm:$0xff] %vm101, %v98
    // Predicated region
    $region14: #{linear_pallas.1} parent=1 // pred_check
      _
    $region15: #{linear_pallas.1} parent=1 // pred_check_branch
      %104 = sbr.rel (0) target = $region17
    $region16: #{linear_pallas.1} parent=1 // pred_region
      %s106 = ssub.s32 128, 128
      %107 = vsyncadd [#allocation3], %s106
      %s109 = sshll.u32 [#allocation2], 4
      %s110 = int_to_ptr.vmem [resolvable:$true] %s109
      %112 = dma.vmem_to_hbm [thread:$0]  %s110, 128, %s3, [#allocation3]
    $region17: #{linear_pallas.1} parent=1 // pred_fallthru
      _
    // Predicated region
    $region18: #{linear_pallas.1} parent=1 // pred_check
      _
    $region19: #{linear_pallas.1} parent=1 // pred_check_branch
      %114 = sbr.rel (0) target = $region21
    $region20: #{linear_pallas.1} parent=1 // pred_region
      %115 = dma.done [#allocation3], 128
    $region21: #{linear_pallas.1} parent=1 // pred_fallthru
      _
    %116 = vsyncpa [#allocation3], 1

</llo_original>
